<compile_context>
chip_gen: v7x
topology: tpu7x:2x2x1
jax: 0.10.0
libtpu: 0.0.40
codegen_flags: <defaults>
</compile_context>

<pallas_src>
import jax
import jax.numpy as jnp
from jax.experimental import pallas as pl
from jax.experimental.pallas import tpu as pltpu


def _sae_kernel(x_ref, w1_ref, b1_ref, w2_ref, b2_ref, wc_ref, bc_ref, o_ref):
    # Layer 1: relu(x @ W1 + b1). x is f32 in VMEM; cast to bf16 here (single
    # VPU pass) so the L-wide matmul runs at bf16 MXU rate with f32 accumulate.
    x_bf = x_ref[...].astype(jnp.bfloat16)
    h = jnp.dot(x_bf, w1_ref[...], preferred_element_type=jnp.float32)
    h = jnp.maximum(h + b1_ref[...], 0.0)
    # TODO(synk): dropout is identity at inference; training-mode dropout
    # (pltpu.prng_*) not implemented here.
    # Layer 2: relu(h @ W2 + b2) -- small K, kept fully in f32.
    h = jnp.dot(h, w2_ref[...], preferred_element_type=jnp.float32)
    h = jnp.maximum(h + b2_ref[...], 0.0)
    # Classifier: h @ Wc + bc, stored unpadded as (block_rows, nb_classes).
    out = jnp.dot(h, wc_ref[...], preferred_element_type=jnp.float32)
    o_ref[...] = (out + bc_ref[...]).astype(o_ref.dtype)


def _round_up(n, m):
    return ((n + m - 1) // m) * m


def prepare_params(params):
    """One-time parameter preparation (hoisted out of the per-call path).

    Returns kernel-ready arrays: w1 in bf16 (feeds the bf16 first matmul),
    everything else in f32.
    """
    w1, b1, w2, b2, wc, bc = params
    return (w1.astype(jnp.bfloat16),
            b1.astype(jnp.float32),
            w2.astype(jnp.float32),
            b2.astype(jnp.float32),
            wc.astype(jnp.float32),
            bc.astype(jnp.float32))


def stacked_autoencoder_forward(x, prepared_params, *, max_block_rows=2048):
    """x: (B, L, 1) float32.  Returns (B, nb_classes) float32 (post-squeeze)."""
    w1_bf, b1_f, w2_f, b2_f, wc_f, bc_f = prepared_params
    B, L, C = x.shape
    assert C == 1, "DLWF SAE expects a trailing singleton channel axis"
    # transpose(1, 2): (B, L, 1) -> (B, 1, L).  Because the moved axis is a
    # singleton this is a pure (free) reshape; fold the 1 into the batch rows.
    x2 = x.reshape(B, L)

    nb_classes = wc_f.shape[1]
    d1, d2 = w1_bf.shape[1], w2_f.shape[1]

    # Balanced batch tiles; always >= 2 grid steps so v7x's two TensorCores
    # both get work (harmless on single-TC v5e/v6e).
    num_steps = max(2, pl.cdiv(B, max_block_rows))
    block_rows = min(_round_up(pl.cdiv(B, num_steps), 16), max_block_rows)
    grid = (pl.cdiv(B, block_rows),)
    # NOTE: when B is not a multiple of block_rows, the padded tail rows of the
    # last block compute on unspecified data; those rows never reach the
    # (B, nb_classes) output, so the result is still correct.

    flops = 2 * B * (L * d1 + d1 * d2 + d2 * nb_classes)
    bytes_accessed = (
        x2.size * 4                      # activations, read once as f32
        + w1_bf.size * 2                 # bf16 first-layer weight
        + (w2_f.size + wc_f.size + b1_f.size + b2_f.size + bc_f.size) * 4
        + B * nb_classes * 4)            # unpadded f32 output writeback

    # VMEM sizing from actual block footprints (double-buffered), with 2x
    # headroom and a small floor -- keeps the scoped reservation tiny on v7x.
    block_bytes = (
        2 * block_rows * L * 4           # x tile, double buffered
        + 2 * block_rows * nb_classes * 4  # out tile, double buffered
        + 2 * (w1_bf.size * 2 + (w2_f.size + wc_f.size
                                 + b1_f.size + b2_f.size + bc_f.size) * 4))
    vmem_limit = int(min(max(2 * block_bytes, 4 * 1024 * 1024),
                         32 * 1024 * 1024))

    out = pl.pallas_call(
        _sae_kernel,
        out_shape=jax.ShapeDtypeStruct((B, nb_classes), jnp.float32),
        grid_spec=pltpu.PrefetchScalarGridSpec(
            num_scalar_prefetch=0,
            grid=grid,
            in_specs=[
                # activations: tiled over batch rows, f32 straight from HBM
                pl.BlockSpec((block_rows, L), lambda i: (i, 0)),
                # weights / biases: full blocks, constant index_map keeps them
                # resident in VMEM across grid steps (single DMA each).
                pl.BlockSpec(w1_bf.shape, lambda i: (0, 0)),
                pl.BlockSpec(b1_f.shape, lambda i: (0, 0)),
                pl.BlockSpec(w2_f.shape, lambda i: (0, 0)),
                pl.BlockSpec(b2_f.shape, lambda i: (0, 0)),
                pl.BlockSpec(wc_f.shape, lambda i: (0, 0)),
                pl.BlockSpec(bc_f.shape, lambda i: (0, 0)),
            ],
            out_specs=pl.BlockSpec((block_rows, nb_classes), lambda i: (i, 0)),
        ),
        compiler_params=pltpu.CompilerParams(
            dimension_semantics=("parallel",),
            vmem_limit_bytes=vmem_limit),
        cost_estimate=pl.CostEstimate(
            flops=flops, transcendentals=0, bytes_accessed=bytes_accessed),
    )(x2, w1_bf, b1_f, w2_f, b2_f, wc_f, bc_f)

    # PyTorch: .squeeze() removed the singleton "1" axis -> (B, nb_classes);
    # the kernel already produced that shape, no wrapper slice needed.
    return out


def init_params(key, layer_dims, nb_classes):
    """layer_dims: list of (in_dim, out_dim) for the encoder stack.
    Weights stored (in_dim, out_dim); biases stored (1, out_dim)."""
    params = []
    dims = list(layer_dims) + [(layer_dims[-1][1], nb_classes)]
    for (din, dout) in dims:
        key, kw, kb = jax.random.split(key, 3)
        bound = 1.0 / jnp.sqrt(din)
        w = jax.random.uniform(kw, (din, dout), jnp.float32, -bound, bound)
        b = jax.random.uniform(kb, (1, dout), jnp.float32, -bound, bound)
        params += [w, b]
    return tuple(params)


def reference_forward(x, params):
    """Pure-JAX f32 reference of the PyTorch forward (inference mode)."""
    w1, b1, w2, b2, wc, bc = params
    h = jnp.transpose(x, (0, 2, 1))            # (B, 1, L)
    h = jax.nn.relu(h @ w1 + b1)
    h = jax.nn.relu(h @ w2 + b2)
    h = h @ wc + bc                            # (B, 1, nb_classes)
    return jnp.squeeze(h)


if __name__ == "__main__":
    key = jax.random.PRNGKey(0)

    # Shapes implied by the module:
    #   layers = [{in:128, out:64, dropout:0.1}, {in:64, out:32, dropout:0.0}]
    #   nb_classes = 16
    B, L = 256, 128
    layer_dims = [(128, 64), (64, 32)]
    nb_classes = 16

    key, kx, kp = jax.random.split(key, 3)
    x = jax.random.normal(kx, (B, L, 1), jnp.float32)
    params = init_params(kp, layer_dims, nb_classes)

    # One-time parameter prep (cast/cache), outside the per-call path.
    prepared = jax.block_until_ready(prepare_params(params))

    out = stacked_autoencoder_forward(x, prepared)
    out = jax.block_until_ready(out)

    ref = reference_forward(x, params)
    assert out.shape == (B, nb_classes), out.shape
    # Only the first matmul runs with bf16 operands (f32 accumulation
    # everywhere) -> tight-ish tolerance vs the pure-f32 reference.
    assert jnp.allclose(out, ref, atol=3e-2, rtol=3e-2), (
        "mismatch vs reference; max abs err = "
        f"{float(jnp.max(jnp.abs(out - ref)))}")

    print("KERNEL_OK")
</pallas_src>

<mosaic_0001>
module attributes {stable_mosaic.version = 11 : i64} {
  func.func @_sae_kernel(%arg0: i32, %arg1: memref<128x128xf32, #tpu.memory_space<vmem>>, %arg2: memref<128x64xbf16, #tpu.memory_space<vmem>>, %arg3: memref<1x64xf32, #tpu.memory_space<vmem>>, %arg4: memref<64x32xf32, #tpu.memory_space<vmem>>, %arg5: memref<1x32xf32, #tpu.memory_space<vmem>>, %arg6: memref<32x16xf32, #tpu.memory_space<vmem>>, %arg7: memref<1x16xf32, #tpu.memory_space<vmem>>, %arg8: memref<128x16xf32, #tpu.memory_space<vmem>>) attributes {dimension_semantics = [#tpu.dimension_semantics<parallel>], iteration_bounds = array<i64: 2>, scalar_prefetch = 0 : i64, scratch_operands = 0 : i64, tpu.core_type = #tpu.core_type<tc>, window_params = [{transform_indices = @transform_0, window_bounds = array<i64: 128, 128>}, {pipeline_mode = #tpu.pipeline_mode<synchronous>, transform_indices = @transform_1, window_bounds = array<i64: 128, 64>}, {pipeline_mode = #tpu.pipeline_mode<synchronous>, transform_indices = @transform_2, window_bounds = array<i64: 1, 64>}, {pipeline_mode = #tpu.pipeline_mode<synchronous>, transform_indices = @transform_3, window_bounds = array<i64: 64, 32>}, {pipeline_mode = #tpu.pipeline_mode<synchronous>, transform_indices = @transform_4, window_bounds = array<i64: 1, 32>}, {pipeline_mode = #tpu.pipeline_mode<synchronous>, transform_indices = @transform_5, window_bounds = array<i64: 32, 16>}, {pipeline_mode = #tpu.pipeline_mode<synchronous>, transform_indices = @transform_6, window_bounds = array<i64: 1, 16>}, {transform_indices = @transform_7, window_bounds = array<i64: 128, 16>}]} {
    %c0 = arith.constant 0 : index
    %c0_0 = arith.constant 0 : index
    %0 = vector.load %arg1[%c0, %c0_0] : memref<128x128xf32, #tpu.memory_space<vmem>>, vector<128x128xf32>
    %1 = arith.truncf %0 : vector<128x128xf32> to vector<128x128xbf16>
    %c0_1 = arith.constant 0 : index
    %c0_2 = arith.constant 0 : index
    %2 = vector.load %arg2[%c0_1, %c0_2] : memref<128x64xbf16, #tpu.memory_space<vmem>>, vector<128x64xbf16>
    %cst = arith.constant dense<0.000000e+00> : vector<128x64xf32>
    %3 = tpu.matmul %1, %2, %cst {dimension_numbers = #tpu.dot_dimension_numbers<[1], [0], [0], [1], [0, 0, 1, 1], [], []>} : vector<128x128xbf16>, vector<128x64xbf16>, vector<128x64xf32> -> vector<128x64xf32>
    %c0_3 = arith.constant 0 : index
    %c0_4 = arith.constant 0 : index
    %4 = vector.load %arg3[%c0_3, %c0_4] : memref<1x64xf32, #tpu.memory_space<vmem>>, vector<1x64xf32>
    %5 = vector.broadcast %4 : vector<1x64xf32> to vector<128x64xf32>
    %6 = arith.addf %3, %5 : vector<128x64xf32>
    %cst_5 = arith.constant 0.000000e+00 : f32
    %7 = vector.broadcast %cst_5 : f32 to vector<128x64xf32>
    %8 = arith.maximumf %6, %7 : vector<128x64xf32>
    %c0_6 = arith.constant 0 : index
    %c0_7 = arith.constant 0 : index
    %9 = vector.load %arg4[%c0_6, %c0_7] : memref<64x32xf32, #tpu.memory_space<vmem>>, vector<64x32xf32>
    %cst_8 = arith.constant dense<0.000000e+00> : vector<128x32xf32>
    %10 = tpu.matmul %8, %9, %cst_8 {dimension_numbers = #tpu.dot_dimension_numbers<[1], [0], [0], [1], [0, 0, 1, 1], [], []>} : vector<128x64xf32>, vector<64x32xf32>, vector<128x32xf32> -> vector<128x32xf32>
    %c0_9 = arith.constant 0 : index
    %c0_10 = arith.constant 0 : index
    %11 = vector.load %arg5[%c0_9, %c0_10] : memref<1x32xf32, #tpu.memory_space<vmem>>, vector<1x32xf32>
    %12 = vector.broadcast %11 : vector<1x32xf32> to vector<128x32xf32>
    %13 = arith.addf %10, %12 : vector<128x32xf32>
    %cst_11 = arith.constant 0.000000e+00 : f32
    %14 = vector.broadcast %cst_11 : f32 to vector<128x32xf32>
    %15 = arith.maximumf %13, %14 : vector<128x32xf32>
    %c0_12 = arith.constant 0 : index
    %c0_13 = arith.constant 0 : index
    %16 = vector.load %arg6[%c0_12, %c0_13] : memref<32x16xf32, #tpu.memory_space<vmem>>, vector<32x16xf32>
    %cst_14 = arith.constant dense<0.000000e+00> : vector<128x16xf32>
    %17 = tpu.matmul %15, %16, %cst_14 {dimension_numbers = #tpu.dot_dimension_numbers<[1], [0], [0], [1], [0, 0, 1, 1], [], []>} : vector<128x32xf32>, vector<32x16xf32>, vector<128x16xf32> -> vector<128x16xf32>
    %c0_15 = arith.constant 0 : index
    %c0_16 = arith.constant 0 : index
    %18 = vector.load %arg7[%c0_15, %c0_16] : memref<1x16xf32, #tpu.memory_space<vmem>>, vector<1x16xf32>
    %19 = vector.broadcast %18 : vector<1x16xf32> to vector<128x16xf32>
    %20 = arith.addf %17, %19 : vector<128x16xf32>
    %c0_17 = arith.constant 0 : index
    %c0_18 = arith.constant 0 : index
    %21 = vector.load %arg8[%c0_17, %c0_18] : memref<128x16xf32, #tpu.memory_space<vmem>>, vector<128x16xf32>
    tpu.vector_store %arg8[%c0_17, %c0_18], %20 {strides = array<i32>} : memref<128x16xf32, #tpu.memory_space<vmem>>, vector<128x16xf32>,
    return
  }
  func.func @transform_0(%arg0: i32) -> (i32, i32) {
    %c0_i32 = arith.constant 0 : i32
    %c0_i32_0 = arith.constant 0 : i32
    return %arg0, %c0_i32 : i32, i32
  }
  func.func @transform_1(%arg0: i32) -> (i32, i32) {
    %c0_i32 = arith.constant 0 : i32
    %c0_i32_0 = arith.constant 0 : i32
    %c0_i32_1 = arith.constant 0 : i32
    return %c0_i32, %c0_i32_0 : i32, i32
  }
  func.func @transform_2(%arg0: i32) -> (i32, i32) {
    %c0_i32 = arith.constant 0 : i32
    %c0_i32_0 = arith.constant 0 : i32
    %c0_i32_1 = arith.constant 0 : i32
    return %c0_i32, %c0_i32_0 : i32, i32
  }
  func.func @transform_3(%arg0: i32) -> (i32, i32) {
    %c0_i32 = arith.constant 0 : i32
    %c0_i32_0 = arith.constant 0 : i32
    %c0_i32_1 = arith.constant 0 : i32
    return %c0_i32, %c0_i32_0 : i32, i32
  }
  func.func @transform_4(%arg0: i32) -> (i32, i32) {
    %c0_i32 = arith.constant 0 : i32
    %c0_i32_0 = arith.constant 0 : i32
    %c0_i32_1 = arith.constant 0 : i32
    return %c0_i32, %c0_i32_0 : i32, i32
  }
  func.func @transform_5(%arg0: i32) -> (i32, i32) {
    %c0_i32 = arith.constant 0 : i32
    %c0_i32_0 = arith.constant 0 : i32
    %c0_i32_1 = arith.constant 0 : i32
    return %c0_i32, %c0_i32_0 : i32, i32
  }
  func.func @transform_6(%arg0: i32) -> (i32, i32) {
    %c0_i32 = arith.constant 0 : i32
    %c0_i32_0 = arith.constant 0 : i32
    %c0_i32_1 = arith.constant 0 : i32
    return %c0_i32, %c0_i32_0 : i32, i32
  }
  func.func @transform_7(%arg0: i32) -> (i32, i32) {
    %c0_i32 = arith.constant 0 : i32
    %c0_i32_0 = arith.constant 0 : i32
    return %arg0, %c0_i32 : i32, i32
  }
}

</mosaic_0001>

<llo_original>
// kernel: tpu_custom_call.1
$region0: #{tpu_custom_call.1}
  #allocation0 [shape = 'u32[]', space=smem, size = 0x4, offset = 0x4, fixed_abs, tag = 'smem constant byte address 0x4 - core index']
  #allocation1 [shape = 'u32[144,128]{1,0:T(1,128)}', space=vmem, size = 0x12000, scoped, tag = 'internal scratch']
  %s0 = inlined_call_operand.hbm [shape: f32[256,128], index: 0, kind: input, shape index: {}]
  %s1 = inlined_call_operand.vmem [shape: bf16[128,64], index: 1, kind: input, shape index: {}]
  %s2 = inlined_call_operand.vmem [shape: f32[1,64], index: 2, kind: input, shape index: {}]
  %s3 = inlined_call_operand.vmem [shape: f32[64,32], index: 3, kind: input, shape index: {}]
  %s4 = inlined_call_operand.vmem [shape: f32[1,32], index: 4, kind: input, shape index: {}]
  %s5 = inlined_call_operand.vmem [shape: f32[32,16], index: 5, kind: input, shape index: {}]
  %s6 = inlined_call_operand.vmem [shape: f32[1,16], index: 6, kind: input, shape index: {}]
  %s7 = inlined_call_operand.vmem [shape: f32[256,16], index: 7, kind: output, shape index: {}]
  %s8 = sld [smem:[#allocation0]]
  $region65: #{tpu_custom_call.1} parent=0
    _
  %s10 = ssub.s32 1, %s8
  %s11 = scalar_select 0, %s10, %s8
  $region1: #{tpu_custom_call.1} parent=0
    #allocation2 [shape = 'u8[131072]{0}', space=vmem, size = 0x20000, scoped, tag = 'input window, operand 0']
    #allocation3 [shape = 's32[2]{0}', space=sflag, size = 0x8, scoped, tag = 'scoped memory for tpu_custom_call.1']
    %12 = vsyncpa [#allocation3], 0
    %s13 = scalar_lea.sflag [#allocation3], 1
    %14 = vsyncpa %s13, 0
    loop: start=0, step=1, limit=4
    $region2: #{tpu_custom_call.1} parent=1 // loop_pre_header
      _
    $region3: #{tpu_custom_call.1} parent=1 // loop_header
      %s16 = sphi 0, %s20
      %p17 = scmp.ge.s32.totalorder %s16, 4
      %s26 = sphi 0, %s28
      %s29 = sphi 0, %s26
      %s30 = sphi 0, %s29
      %s46 = sphi 0, %s30
      %s50 = sphi 0, %s50
      %s52 = sphi 0, %s50
      %s53 = sphi 0, %s52
      %s67 = sphi 0, %s53
      %s71 = sphi 0, %s71
      %s73 = sphi 0, %s71
      %s74 = sphi 0, %s73
      %s88 = sphi 0, %s74
      %s92 = sphi 0, %s92
      %s94 = sphi 0, %s92
      %s95 = sphi 0, %s94
      %s109 = sphi 0, %s95
      %s113 = sphi 0, %s113
      %s115 = sphi 0, %s113
      %s116 = sphi 0, %s115
      %s130 = sphi 0, %s116
      %s134 = sphi 0, %s134
      %s136 = sphi 0, %s134
      %s137 = sphi 0, %s136
      %s151 = sphi 0, %s137
      %s155 = sphi 0, %s155
      %s157 = sphi 0, %s155
      %s158 = sphi 0, %s157
      %s172 = sphi 0, %s158
      %s178 = sphi 0, %s180
      %s181 = sphi 0, %s178
      %s182 = sphi 0, %s181
      %s198 = sphi 0, %s182
    $region4: #{tpu_custom_call.1} parent=1 // loop_header_branch
      %19 = sbr.rel (%p17) target = $region8
    $region5: #{tpu_custom_call.1} parent=1 // loop_body
      %s21 = ssub.s32 %s16, 1
      %s22 = ssub.s32 %s16, 2
      %s23 = sadd.s32 %s16, 1
      %s24 = ssub.s32 %s16, %s23
      %p25 = scmp.eq.s32.totalorder %s24, 0
      %s27 = sadd.s32 %s26, 1
      %s28 = scalar_select %p25, %s26, %s27
      %p31 = pneg %p25
      %p32 = scmp.eq.s32.totalorder %s16, 1
      %p33 = por %p31, %p32
      %p34 = scmp.ne.s32.totalorder %s26, %s29
      %p35 = scmp.eq.s32.totalorder %s16, 0
      %p36 = por %p34, %p35
      %p37 = scmp.ne.s32.totalorder %s26, %s29
      %p38 = scmp.eq.s32.totalorder %s21, 1
      %p39 = por %p37, %p38
      %p40 = scmp.ne.s32.totalorder %s29, %s30
      %p41 = scmp.eq.s32.totalorder %s21, 0
      %p42 = por %p40, %p41
      %p43 = scmp.ne.s32.totalorder %s29, %s30
      %p44 = scmp.eq.s32.totalorder %s22, 1
      %p45 = por %p43, %p44
      %p47 = scmp.ne.s32.totalorder %s30, %s46
      %p48 = scmp.eq.s32.totalorder %s22, 0
      %p49 = por %p47, %p48
      %s51 = sadd.s32 %s50, 1
      %p54 = scmp.eq.s32.totalorder %s16, 1
      %p55 = scmp.ne.s32.totalorder %s50, %s52
      %p56 = scmp.eq.s32.totalorder %s16, 0
      %p57 = por %p55, %p56
      %p58 = scmp.ne.s32.totalorder %s50, %s52
      %p59 = scmp.eq.s32.totalorder %s21, 1
      %p60 = por %p58, %p59
      %p61 = scmp.ne.s32.totalorder %s52, %s53
      %p62 = scmp.eq.s32.totalorder %s21, 0
      %p63 = por %p61, %p62
      %p64 = scmp.ne.s32.totalorder %s52, %s53
      %p65 = scmp.eq.s32.totalorder %s22, 1
      %p66 = por %p64, %p65
      %p68 = scmp.ne.s32.totalorder %s53, %s67
      %p69 = scmp.eq.s32.totalorder %s22, 0
      %p70 = por %p68, %p69
      %s72 = sadd.s32 %s71, 1
      %p75 = scmp.eq.s32.totalorder %s16, 1
      %p76 = scmp.ne.s32.totalorder %s71, %s73
      %p77 = scmp.eq.s32.totalorder %s16, 0
      %p78 = por %p76, %p77
      %p79 = scmp.ne.s32.totalorder %s71, %s73
      %p80 = scmp.eq.s32.totalorder %s21, 1
      %p81 = por %p79, %p80
      %p82 = scmp.ne.s32.totalorder %s73, %s74
      %p83 = scmp.eq.s32.totalorder %s21, 0
      %p84 = por %p82, %p83
      %p85 = scmp.ne.s32.totalorder %s73, %s74
      %p86 = scmp.eq.s32.totalorder %s22, 1
      %p87 = por %p85, %p86
      %p89 = scmp.ne.s32.totalorder %s74, %s88
      %p90 = scmp.eq.s32.totalorder %s22, 0
      %p91 = por %p89, %p90
      %s93 = sadd.s32 %s92, 1
      %p96 = scmp.eq.s32.totalorder %s16, 1
      %p97 = scmp.ne.s32.totalorder %s92, %s94
      %p98 = scmp.eq.s32.totalorder %s16, 0
      %p99 = por %p97, %p98
      %p100 = scmp.ne.s32.totalorder %s92, %s94
      %p101 = scmp.eq.s32.totalorder %s21, 1
      %p102 = por %p100, %p101
      %p103 = scmp.ne.s32.totalorder %s94, %s95
      %p104 = scmp.eq.s32.totalorder %s21, 0
      %p105 = por %p103, %p104
      %p106 = scmp.ne.s32.totalorder %s94, %s95
      %p107 = scmp.eq.s32.totalorder %s22, 1
      %p108 = por %p106, %p107
      %p110 = scmp.ne.s32.totalorder %s95, %s109
      %p111 = scmp.eq.s32.totalorder %s22, 0
      %p112 = por %p110, %p111
      %s114 = sadd.s32 %s113, 1
      %p117 = scmp.eq.s32.totalorder %s16, 1
      %p118 = scmp.ne.s32.totalorder %s113, %s115
      %p119 = scmp.eq.s32.totalorder %s16, 0
      %p120 = por %p118, %p119
      %p121 = scmp.ne.s32.totalorder %s113, %s115
      %p122 = scmp.eq.s32.totalorder %s21, 1
      %p123 = por %p121, %p122
      %p124 = scmp.ne.s32.totalorder %s115, %s116
      %p125 = scmp.eq.s32.totalorder %s21, 0
      %p126 = por %p124, %p125
      %p127 = scmp.ne.s32.totalorder %s115, %s116
      %p128 = scmp.eq.s32.totalorder %s22, 1
      %p129 = por %p127, %p128
      %p131 = scmp.ne.s32.totalorder %s116, %s130
      %p132 = scmp.eq.s32.totalorder %s22, 0
      %p133 = por %p131, %p132
      %s135 = sadd.s32 %s134, 1
      %p138 = scmp.eq.s32.totalorder %s16, 1
      %p139 = scmp.ne.s32.totalorder %s134, %s136
      %p140 = scmp.eq.s32.totalorder %s16, 0
      %p141 = por %p139, %p140
      %p142 = scmp.ne.s32.totalorder %s134, %s136
      %p143 = scmp.eq.s32.totalorder %s21, 1
      %p144 = por %p142, %p143
      %p145 = scmp.ne.s32.totalorder %s136, %s137
      %p146 = scmp.eq.s32.totalorder %s21, 0
      %p147 = por %p145, %p146
      %p148 = scmp.ne.s32.totalorder %s136, %s137
      %p149 = scmp.eq.s32.totalorder %s22, 1
      %p150 = por %p148, %p149
      %p152 = scmp.ne.s32.totalorder %s137, %s151
      %p153 = scmp.eq.s32.totalorder %s22, 0
      %p154 = por %p152, %p153
      %s156 = sadd.s32 %s155, 1
      %p159 = scmp.eq.s32.totalorder %s16, 1
      %p160 = scmp.ne.s32.totalorder %s155, %s157
      %p161 = scmp.eq.s32.totalorder %s16, 0
      %p162 = por %p160, %p161
      %p163 = scmp.ne.s32.totalorder %s155, %s157
      %p164 = scmp.eq.s32.totalorder %s21, 1
      %p165 = por %p163, %p164
      %p166 = scmp.ne.s32.totalorder %s157, %s158
      %p167 = scmp.eq.s32.totalorder %s21, 0
      %p168 = por %p166, %p167
      %p169 = scmp.ne.s32.totalorder %s157, %s158
      %p170 = scmp.eq.s32.totalorder %s22, 1
      %p171 = por %p169, %p170
      %p173 = scmp.ne.s32.totalorder %s158, %s172
      %p174 = scmp.eq.s32.totalorder %s22, 0
      %p175 = por %p173, %p174
      %s176 = ssub.s32 %s16, %s23
      %p177 = scmp.eq.s32.totalorder %s176, 0
      %s179 = sadd.s32 %s178, 1
      %s180 = scalar_select %p177, %s178, %s179
      %p183 = pneg %p177
      %p184 = scmp.eq.s32.totalorder %s16, 1
      %p185 = por %p183, %p184
      %p186 = scmp.ne.s32.totalorder %s178, %s181
      %p187 = scmp.eq.s32.totalorder %s16, 0
      %p188 = por %p186, %p187
      %p189 = scmp.ne.s32.totalorder %s178, %s181
      %p190 = scmp.eq.s32.totalorder %s21, 1
      %p191 = por %p189, %p190
      %p192 = scmp.ne.s32.totalorder %s181, %s182
      %p193 = scmp.eq.s32.totalorder %s21, 0
      %p194 = por %p192, %p193
      %p195 = scmp.ne.s32.totalorder %s181, %s182
      %p196 = scmp.eq.s32.totalorder %s22, 1
      %p197 = por %p195, %p196
      %p199 = scmp.ne.s32.totalorder %s182, %s198
      %p200 = scmp.eq.s32.totalorder %s22, 0
      %p201 = por %p199, %p200
      %p202 = scmp.le.s32.totalorder 1, %s16
      %p203 = scmp.lt.s32.totalorder %s16, 3
      %p204 = pnand %p202, %p203
      %p205 = pneg %p204
      // Predicated region
      $region9: #{tpu_custom_call.1} parent=5 // pred_check
        _
      $region10: #{tpu_custom_call.1} parent=5 // pred_check_branch
        %207 = sbr.rel (%p204) target = $region12
      $region11: #{tpu_custom_call.1} parent=5 // pred_region
        %s208 = ssub.s32 %s16, 1
        // Predicated region
        $region13: #{tpu_custom_call.1} parent=11 // pred_check
          %p209 = pneg %p63
        $region14: #{tpu_custom_call.1} parent=11 // pred_check_branch
          %211 = sbr.rel (%p209) target = $region16
        $region15: #{tpu_custom_call.1} parent=11 // pred_region
          _
        $region16: #{tpu_custom_call.1} parent=11 // pred_fallthru
          _
        // Predicated region
        $region17: #{tpu_custom_call.1} parent=11 // pred_check
          %p212 = pneg %p84
        $region18: #{tpu_custom_call.1} parent=11 // pred_check_branch
          %214 = sbr.rel (%p212) target = $region20
        $region19: #{tpu_custom_call.1} parent=11 // pred_region
          _
        $region20: #{tpu_custom_call.1} parent=11 // pred_fallthru
          _
        // Predicated region
        $region21: #{tpu_custom_call.1} parent=11 // pred_check
          %p215 = pneg %p105
        $region22: #{tpu_custom_call.1} parent=11 // pred_check_branch
          %217 = sbr.rel (%p215) target = $region24
        $region23: #{tpu_custom_call.1} parent=11 // pred_region
          _
        $region24: #{tpu_custom_call.1} parent=11 // pred_fallthru
          _
        // Predicated region
        $region25: #{tpu_custom_call.1} parent=11 // pred_check
          %p218 = pneg %p126
        $region26: #{tpu_custom_call.1} parent=11 // pred_check_branch
          %220 = sbr.rel (%p218) target = $region28
        $region27: #{tpu_custom_call.1} parent=11 // pred_region
          _
        $region28: #{tpu_custom_call.1} parent=11 // pred_fallthru
          _
        // Predicated region
        $region29: #{tpu_custom_call.1} parent=11 // pred_check
          %p221 = pneg %p147
        $region30: #{tpu_custom_call.1} parent=11 // pred_check_branch
          %223 = sbr.rel (%p221) target = $region32
        $region31: #{tpu_custom_call.1} parent=11 // pred_region
          _
        $region32: #{tpu_custom_call.1} parent=11 // pred_fallthru
          _
        // Predicated region
        $region33: #{tpu_custom_call.1} parent=11 // pred_check
          %p224 = pneg %p168
        $region34: #{tpu_custom_call.1} parent=11 // pred_check_branch
          %226 = sbr.rel (%p224) target = $region36
        $region35: #{tpu_custom_call.1} parent=11 // pred_region
          _
        $region36: #{tpu_custom_call.1} parent=11 // pred_fallthru
          _
      $region12: #{tpu_custom_call.1} parent=5 // pred_fallthru
        _
      %p227 = scmp.lt.s32.totalorder %s16, 2
      // Predicated region
      $region37: #{tpu_custom_call.1} parent=5 // pred_check
        %p228 = pneg %p227
      $region38: #{tpu_custom_call.1} parent=5 // pred_check_branch
        %230 = sbr.rel (%p228) target = $region40
      $region39: #{tpu_custom_call.1} parent=5 // pred_region
        // Predicated region
        $region41: #{tpu_custom_call.1} parent=39 // pred_check
          %p231 = pneg %p36
        $region42: #{tpu_custom_call.1} parent=39 // pred_check_branch
          %233 = sbr.rel (%p231) target = $region44
        $region43: #{tpu_custom_call.1} parent=39 // pred_region
          %s234 = sand.u32 %s26, 1
          %s235 = scalar_lea.sflag [#allocation3], %s234
          %s236 = sand.u32 %s26, 1
          %s237 = smul.addr %s236, 128
          %s238 = scalar_lea.vmem [#allocation2], %s237
          %s239 = smul.u32 16, %s16
          %s241 = ssub.s32 2048, 2048
          %242 = vsyncadd %s235, %s241
          %s243 = smul.addr %s239, 128
          %s244 = scalar_lea.hbm %s0, %s243
          %s245 = sshll.u32 %s238, 4
          %s246 = int_to_ptr.vmem [resolvable:$true] %s245
          %251 = dma.hbm_to_vmem [thread:$0]  %s244, 2048, %s246, %s235, 128, 128, 8
        $region44: #{tpu_custom_call.1} parent=39 // pred_fallthru
          _
      $region40: #{tpu_custom_call.1} parent=5 // pred_fallthru
        _
      %p252 = scmp.le.s32.totalorder 1, %s16
      %p253 = scmp.lt.s32.totalorder %s16, 3
      %p254 = pnand %p252, %p253
      %p255 = pneg %p254
      // Predicated region
      $region45: #{tpu_custom_call.1} parent=5 // pred_check
        _
      $region46: #{tpu_custom_call.1} parent=5 // pred_check_branch
        %257 = sbr.rel (%p254) target = $region48
      $region47: #{tpu_custom_call.1} parent=5 // pred_region
        %s258 = ssub.s32 %s16, 1
        %s259 = sand.u32 %s29, 1
        %s260 = scalar_lea.sflag [#allocation3], %s259
        %s261 = sand.u32 %s29, 1
        %s262 = smul.addr %s261, 128
        %s263 = scalar_lea.vmem [#allocation2], %s262
        // Predicated region
        $region49: #{tpu_custom_call.1} parent=47 // pred_check
          %p264 = pneg %p42
        $region50: #{tpu_custom_call.1} parent=47 // pred_check_branch
          %266 = sbr.rel (%p264) target = $region52
        $region51: #{tpu_custom_call.1} parent=47 // pred_region
          %267 = dma.done %s260, 2048
        $region52: #{tpu_custom_call.1} parent=47 // pred_fallthru
          _
        %s268 = sand.u32 %s29, 1
        %s269 = scalar_lea.sflag [#allocation3], %s268
        %s270 = sand.u32 %s29, 1
        %s271 = smul.addr %s270, 128
        %s272 = scalar_lea.vmem [#allocation2], %s271
        %p273 = pneg %p42
        %p274 = pneg %p39
        %p275 = pneg %p63
        %p276 = pneg %p60
        %p277 = pneg %p84
        %p278 = pneg %p81
        %p279 = pneg %p105
        %p280 = pneg %p102
        %p281 = pneg %p126
        %p282 = pneg %p123
        %p283 = pneg %p147
        %p284 = pneg %p144
        %p285 = pneg %p168
        %p286 = pneg %p165
        %p287 = pneg %p194
        %p288 = pneg %p191
        %s289 = smul.u32 16, %s21
        %p290 = scmp.lt.s32.totalorder %s289, 31
        %s291 = scalar_select %p290, %s289, 31
        %s292 = smul.addr %s291, 8
        %s293 = scalar_lea.vmem %s7, %s292
        %s294 = smul.u32 16, %s21
        %s295 = smul.u32 16, %s21
        %p296 = scmp.lt.s32.totalorder %s295, 31
        %s297 = scalar_select %p296, %s295, 31
        %s298 = smul.addr %s297, 8
        %s299 = scalar_lea.vmem %s7, %s298
        %s300 = smul.u32 16, %s21
        %v302 = vld [vmem:[%s263] sm:$0xff]
        %v303 = vld [vmem:[%s263 + $0x8] sm:$0xff]
        %v304 = vld [vmem:[%s263 + $0x10] sm:$0xff]
        %v305 = vld [vmem:[%s263 + $0x18] sm:$0xff]
        %v306 = vld [vmem:[%s263 + $0x20] sm:$0xff]
        %v307 = vld [vmem:[%s263 + $0x28] sm:$0xff]
        %v308 = vld [vmem:[%s263 + $0x30] sm:$0xff]
        %v309 = vld [vmem:[%s263 + $0x38] sm:$0xff]
        %v310 = vld [vmem:[%s263 + $0x40] sm:$0xff]
        %v311 = vld [vmem:[%s263 + $0x48] sm:$0xff]
        %v312 = vld [vmem:[%s263 + $0x50] sm:$0xff]
        %v313 = vld [vmem:[%s263 + $0x58] sm:$0xff]
        %v314 = vld [vmem:[%s263 + $0x60] sm:$0xff]
        %v315 = vld [vmem:[%s263 + $0x68] sm:$0xff]
        %v316 = vld [vmem:[%s263 + $0x70] sm:$0xff]
        %v317 = vld [vmem:[%s263 + $0x78] sm:$0xff]
        %v318 = vpack.c.bf16 %v303, %v302
        %v319 = vpack.c.bf16 %v305, %v304
        %v320 = vpack.c.bf16 %v307, %v306
        %v321 = vpack.c.bf16 %v309, %v308
        %v322 = vpack.c.bf16 %v311, %v310
        %v323 = vpack.c.bf16 %v313, %v312
        %v324 = vpack.c.bf16 %v315, %v314
        %v325 = vpack.c.bf16 %v317, %v316
        %v326 = vld [vmem:[%s1] sm:$0xf]
        %v327 = vld [vmem:[%s1 + $0x4] sm:$0xf]
        %v328 = vld [vmem:[%s1 + $0x8] sm:$0xf]
        %v329 = vld [vmem:[%s1 + $0xc] sm:$0xf]
        %v330 = vld [vmem:[%s1 + $0x10] sm:$0xf]
        %v331 = vld [vmem:[%s1 + $0x14] sm:$0xf]
        %v332 = vld [vmem:[%s1 + $0x18] sm:$0xf]
        %v333 = vld [vmem:[%s1 + $0x1c] sm:$0xf]
        %v334 = vld [vmem:[%s1 + $0x20] sm:$0xf]
        %v335 = vld [vmem:[%s1 + $0x24] sm:$0xf]
        %v336 = vld [vmem:[%s1 + $0x28] sm:$0xf]
        %v337 = vld [vmem:[%s1 + $0x2c] sm:$0xf]
        %v338 = vld [vmem:[%s1 + $0x30] sm:$0xf]
        %v339 = vld [vmem:[%s1 + $0x34] sm:$0xf]
        %v340 = vld [vmem:[%s1 + $0x38] sm:$0xf]
        %v341 = vld [vmem:[%s1 + $0x3c] sm:$0xf]
        %v342 = vld [vmem:[%s2] sm:$0x1]
        %v344 = vlaneseq
        %v345 = vshrl.u32 %v344, 7
        %v346 = vsub.s32 0, %v345
        %v347 = vrot.slane %v342, %v346
        %v365 = vunpack.c.l.b16 %v326
        %v366 = vunpack.c.l.b16 %v327
        %v367 = vunpack.c.l.b16 %v328
        %v368 = vunpack.c.l.b16 %v329
        %v369 = vunpack.c.l.b16 %v330
        %v370 = vunpack.c.l.b16 %v331
        %v371 = vunpack.c.l.b16 %v332
        %v372 = vunpack.c.l.b16 %v333
        %v373 = vunpack.c.l.b16 %v334
        %v374 = vunpack.c.l.b16 %v335
        %v375 = vunpack.c.l.b16 %v336
        %v376 = vunpack.c.l.b16 %v337
        %v377 = vunpack.c.l.b16 %v338
        %v378 = vunpack.c.l.b16 %v339
        %v379 = vunpack.c.l.b16 %v340
        %v380 = vunpack.c.l.b16 %v341
        %v381 = vpack.c.b16 %v366, %v365
        %v382 = vpack.c.b16 %v368, %v367
        %v383 = vpack.c.b16 %v370, %v369
        %v384 = vpack.c.b16 %v372, %v371
        %v385 = vpack.c.b16 %v374, %v373
        %v386 = vpack.c.b16 %v376, %v375
        %v387 = vpack.c.b16 %v378, %v377
        %v388 = vpack.c.b16 %v380, %v379
        %397 = vmatprep.subr.bf16.mxu0 0
        %398 = vmatpush1.bf16.msra.mxu0 %v381
        %399 = vmatprep.subr.bf16.mxu0 0
        %400 = vmatpush1.bf16.msra.mxu0 %v382
        %401 = vmatprep.subr.bf16.mxu0 0
        %402 = vmatpush1.bf16.msra.mxu0 %v383
        %403 = vmatprep.subr.bf16.mxu0 0
        %404 = vmatpush1.bf16.msra.mxu0 %v384
        %405 = vmatprep.subr.bf16.mxu0 0
        %406 = vmatpush1.bf16.msra.mxu0 %v385
        %407 = vmatprep.subr.bf16.mxu0 0
        %408 = vmatpush1.bf16.msra.mxu0 %v386
        %409 = vmatprep.subr.bf16.mxu0 0
        %410 = vmatpush1.bf16.msra.mxu0 %v387
        %411 = vmatprep.subr.bf16.mxu0 0
        %412 = vmatpush1.bf16.msra.mxu0 %v388
        %413 = vmatprep.subr.bf16.mxu0 0
        %414 = vmatpush1.bf16.msra.mxu0 0
        %415 = vmatprep.subr.bf16.mxu0 0
        %416 = vmatpush1.bf16.msra.mxu0 0
        %417 = vmatprep.subr.bf16.mxu0 0
        %418 = vmatpush1.bf16.msra.mxu0 0
        %419 = vmatprep.subr.bf16.mxu0 0
        %420 = vmatpush1.bf16.msra.mxu0 0
        %421 = vmatprep.subr.bf16.mxu0 0
        %422 = vmatpush1.bf16.msra.mxu0 0
        %423 = vmatprep.subr.bf16.mxu0 0
        %424 = vmatpush1.bf16.msra.mxu0 0
        %425 = vmatprep.subr.bf16.mxu0 0
        %426 = vmatpush1.bf16.msra.mxu0 0
        %427 = vmatprep.subr.bf16.mxu0 0
        %428 = vmatpush1.bf16.msra.mxu0 0
        %429 = vmatprep.mubr.bf16.mxu0 0
        %430 = vmatmul.mubr.bf16.gmra.mrb[0].mxu0 %v318
        %v431 = vpop.f32.mrb[0].mxu0
        %v432 = vadd.f32 %v347, %v431
        %v433 = vpop.f32.mrb[0].mxu0
        %v434 = vpop.f32.mrb[0].mxu0
        %v435 = vadd.f32 %v347, %v434
        %v436 = vpop.f32.mrb[0].mxu0
        %437 = vmatprep.mubr.bf16.mxu0 0
        %438 = vmatmul.mubr.bf16.gmra.mrb[0].mxu0 %v319
        %v439 = vpop.f32.mrb[0].mxu0
        %v440 = vadd.f32 %v347, %v439
        %v441 = vpop.f32.mrb[0].mxu0
        %v442 = vpop.f32.mrb[0].mxu0
        %v443 = vadd.f32 %v347, %v442
        %v444 = vpop.f32.mrb[0].mxu0
        %445 = vmatprep.mubr.bf16.mxu0 0
        %446 = vmatmul.mubr.bf16.gmra.mrb[0].mxu0 %v320
        %v447 = vpop.f32.mrb[0].mxu0
        %v448 = vadd.f32 %v347, %v447
        %v449 = vpop.f32.mrb[0].mxu0
        %v450 = vpop.f32.mrb[0].mxu0
        %v451 = vadd.f32 %v347, %v450
        %v452 = vpop.f32.mrb[0].mxu0
        %453 = vmatprep.mubr.bf16.mxu0 0
        %454 = vmatmul.mubr.bf16.gmra.mrb[0].mxu0 %v321
        %v455 = vpop.f32.mrb[0].mxu0
        %v456 = vadd.f32 %v347, %v455
        %v457 = vpop.f32.mrb[0].mxu0
        %v458 = vpop.f32.mrb[0].mxu0
        %v459 = vadd.f32 %v347, %v458
        %v460 = vpop.f32.mrb[0].mxu0
        %461 = vmatprep.mubr.bf16.mxu0 0
        %462 = vmatmul.mubr.bf16.gmra.mrb[0].mxu0 %v322
        %v463 = vpop.f32.mrb[0].mxu0
        %v464 = vadd.f32 %v347, %v463
        %v465 = vpop.f32.mrb[0].mxu0
        %v466 = vpop.f32.mrb[0].mxu0
        %v467 = vadd.f32 %v347, %v466
        %v468 = vpop.f32.mrb[0].mxu0
        %469 = vmatprep.mubr.bf16.mxu0 0
        %470 = vmatmul.mubr.bf16.gmra.mrb[0].mxu0 %v323
        %v471 = vpop.f32.mrb[0].mxu0
        %v472 = vadd.f32 %v347, %v471
        %v473 = vpop.f32.mrb[0].mxu0
        %v474 = vpop.f32.mrb[0].mxu0
        %v475 = vadd.f32 %v347, %v474
        %v476 = vpop.f32.mrb[0].mxu0
        %477 = vmatprep.mubr.bf16.mxu0 0
        %478 = vmatmul.mubr.bf16.gmra.mrb[0].mxu0 %v324
        %v479 = vpop.f32.mrb[0].mxu0
        %v480 = vadd.f32 %v347, %v479
        %v481 = vpop.f32.mrb[0].mxu0
        %v482 = vpop.f32.mrb[0].mxu0
        %v483 = vadd.f32 %v347, %v482
        %v484 = vpop.f32.mrb[0].mxu0
        %485 = vmatprep.mubr.bf16.mxu0 0
        %486 = vmatmul.mubr.bf16.gmra.mrb[0].mxu0 %v325
        %v487 = vpop.f32.mrb[0].mxu0
        %v488 = vadd.f32 %v347, %v487
        %v489 = vpop.f32.mrb[0].mxu0
        %v490 = vpop.f32.mrb[0].mxu0
        %v491 = vadd.f32 %v347, %v490
        %v492 = vpop.f32.mrb[0].mxu0
        %493 = vdwg.mxu0
        %v494 = vmax.f32 %v432, 0.0
        %v495 = vmax.f32 %v435, 0.0
        %v496 = vmax.f32 %v440, 0.0
        %v497 = vmax.f32 %v443, 0.0
        %v498 = vmax.f32 %v448, 0.0
        %v499 = vmax.f32 %v451, 0.0
        %v500 = vmax.f32 %v456, 0.0
        %v501 = vmax.f32 %v459, 0.0
        %v502 = vmax.f32 %v464, 0.0
        %v503 = vmax.f32 %v467, 0.0
        %v504 = vmax.f32 %v472, 0.0
        %v505 = vmax.f32 %v475, 0.0
        %v506 = vmax.f32 %v480, 0.0
        %v507 = vmax.f32 %v483, 0.0
        %v508 = vmax.f32 %v488, 0.0
        %v509 = vmax.f32 %v491, 0.0
        %v510 = vld [vmem:[%s3] sm:$0xff]
        %v511 = vld [vmem:[%s3 + $0x8] sm:$0xff]
        %v512 = vld [vmem:[%s3 + $0x10] sm:$0xff]
        %v513 = vld [vmem:[%s3 + $0x18] sm:$0xff]
        %v514 = vld [vmem:[%s3 + $0x20] sm:$0xff]
        %v515 = vld [vmem:[%s3 + $0x28] sm:$0xff]
        %v516 = vld [vmem:[%s3 + $0x30] sm:$0xff]
        %v517 = vld [vmem:[%s3 + $0x38] sm:$0xff]
        %v518 = vld [vmem:[%s4] sm:$0x1]
        %v520 = vlaneseq
        %v521 = vshrl.u32 %v520, 7
        %v522 = vsub.s32 0, %v521
        %v523 = vrot.slane %v518, %v522
        %vm525 = vcmask 523264
        %v527 = vsel %vm525, %v494, 0
        %v530 = vsel %vm525, %v495, 0
        %v533 = vsel %vm525, %v496, 0
        %v536 = vsel %vm525, %v497, 0
        %v539 = vsel %vm525, %v498, 0
        %v542 = vsel %vm525, %v499, 0
        %v545 = vsel %vm525, %v500, 0
        %v548 = vsel %vm525, %v501, 0
        %v551 = vsel %vm525, %v502, 0
        %v554 = vsel %vm525, %v503, 0
        %v557 = vsel %vm525, %v504, 0
        %v560 = vsel %vm525, %v505, 0
        %v563 = vsel %vm525, %v506, 0
        %v566 = vsel %vm525, %v507, 0
        %v569 = vsel %vm525, %v508, 0
        %v572 = vsel %vm525, %v509, 0
        %574 = vmatprep.subr.mxu0 0.0
        %575 = vmatpush1.msra.mxu0 %v510
        %576 = vmatprep.subr.mxu0 0.0
        %577 = vmatpush1.msra.mxu0 %v511
        %578 = vmatprep.subr.mxu0 0.0
        %579 = vmatpush1.msra.mxu0 %v512
        %580 = vmatprep.subr.mxu0 0.0
        %581 = vmatpush1.msra.mxu0 %v513
        %582 = vmatprep.subr.mxu0 0.0
        %583 = vmatpush1.msra.mxu0 %v514
        %584 = vmatprep.subr.mxu0 0.0
        %585 = vmatpush1.msra.mxu0 %v515
        %586 = vmatprep.subr.mxu0 0.0
        %587 = vmatpush1.msra.mxu0 %v516
        %588 = vmatprep.subr.mxu0 0.0
        %589 = vmatpush1.msra.mxu0 %v517
        %590 = vmatprep.subr.mxu0 0.0
        %591 = vmatpush1.msra.mxu0 0.0
        %592 = vmatprep.subr.mxu0 0.0
        %593 = vmatpush1.msra.mxu0 0.0
        %594 = vmatprep.subr.mxu0 0.0
        %595 = vmatpush1.msra.mxu0 0.0
        %596 = vmatprep.subr.mxu0 0.0
        %597 = vmatpush1.msra.mxu0 0.0
        %598 = vmatprep.subr.mxu0 0.0
        %599 = vmatpush1.msra.mxu0 0.0
        %600 = vmatprep.subr.mxu0 0.0
        %601 = vmatpush1.msra.mxu0 0.0
        %602 = vmatprep.subr.mxu0 0.0
        %603 = vmatpush1.msra.mxu0 0.0
        %604 = vmatprep.subr.mxu0 0.0
        %605 = vmatpush1.msra.mxu0 0.0
        %606 = vmatprep.subr.mxu0 0.0
        %607 = vmatpush1.msra.mxu0 0.0
        %608 = vmatprep.subr.mxu0 0.0
        %609 = vmatpush1.msra.mxu0 0.0
        %610 = vmatprep.subr.mxu0 0.0
        %611 = vmatpush1.msra.mxu0 0.0
        %612 = vmatprep.subr.mxu0 0.0
        %613 = vmatpush1.msra.mxu0 0.0
        %614 = vmatprep.subr.mxu0 0.0
        %615 = vmatpush1.msra.mxu0 0.0
        %616 = vmatprep.subr.mxu0 0.0
        %617 = vmatpush1.msra.mxu0 0.0
        %618 = vmatprep.subr.mxu0 0.0
        %619 = vmatpush1.msra.mxu0 0.0
        %620 = vmatprep.subr.mxu0 0.0
        %621 = vmatpush1.msra.mxu0 0.0
        %622 = vmatprep.subr.mxu0 0.0
        %623 = vmatpush1.msra.mxu0 0.0
        %624 = vmatprep.subr.mxu0 0.0
        %625 = vmatpush1.msra.mxu0 0.0
        %626 = vmatprep.subr.mxu0 0.0
        %627 = vmatpush1.msra.mxu0 0.0
        %628 = vmatprep.subr.mxu0 0.0
        %629 = vmatpush1.msra.mxu0 0.0
        %630 = vmatprep.subr.mxu0 0.0
        %631 = vmatpush1.msra.mxu0 0.0
        %632 = vmatprep.subr.mxu0 0.0
        %633 = vmatpush1.msra.mxu0 0.0
        %634 = vmatprep.subr.mxu0 0.0
        %635 = vmatpush1.msra.mxu0 0.0
        %636 = vmatprep.subr.mxu0 0.0
        %637 = vmatpush1.msra.mxu0 0.0
        %638 = vmatprep.mubr.f32.mxu0 0.0
        %639 = vmatmul.mubr.f32.gmra.mrb[0].mxu0 %v527
        %v640 = vpop.f32.mrb[0].mxu0
        %v641 = vadd.f32 %v523, %v640
        %v642 = vpop.f32.mrb[0].mxu0
        %643 = vmatprep.mubr.f32.mxu0 0.0
        %644 = vmatmul.mubr.f32.gmra.mrb[0].mxu0 %v530
        %v645 = vpop.f32.mrb[0].mxu0
        %v646 = vadd.f32 %v523, %v645
        %v647 = vpop.f32.mrb[0].mxu0
        %648 = vmatprep.mubr.f32.mxu0 0.0
        %649 = vmatmul.mubr.f32.gmra.mrb[0].mxu0 %v533
        %v650 = vpop.f32.mrb[0].mxu0
        %v651 = vadd.f32 %v523, %v650
        %v652 = vpop.f32.mrb[0].mxu0
        %653 = vmatprep.mubr.f32.mxu0 0.0
        %654 = vmatmul.mubr.f32.gmra.mrb[0].mxu0 %v536
        %v655 = vpop.f32.mrb[0].mxu0
        %v656 = vadd.f32 %v523, %v655
        %v657 = vpop.f32.mrb[0].mxu0
        %658 = vmatprep.mubr.f32.mxu0 0.0
        %659 = vmatmul.mubr.f32.gmra.mrb[0].mxu0 %v539
        %v660 = vpop.f32.mrb[0].mxu0
        %v661 = vadd.f32 %v523, %v660
        %v662 = vpop.f32.mrb[0].mxu0
        %663 = vmatprep.mubr.f32.mxu0 0.0
        %664 = vmatmul.mubr.f32.gmra.mrb[0].mxu0 %v542
        %v665 = vpop.f32.mrb[0].mxu0
        %v666 = vadd.f32 %v523, %v665
        %v667 = vpop.f32.mrb[0].mxu0
        %668 = vmatprep.mubr.f32.mxu0 0.0
        %669 = vmatmul.mubr.f32.gmra.mrb[0].mxu0 %v545
        %v670 = vpop.f32.mrb[0].mxu0
        %v671 = vadd.f32 %v523, %v670
        %v672 = vpop.f32.mrb[0].mxu0
        %673 = vmatprep.mubr.f32.mxu0 0.0
        %674 = vmatmul.mubr.f32.gmra.mrb[0].mxu0 %v548
        %v675 = vpop.f32.mrb[0].mxu0
        %v676 = vadd.f32 %v523, %v675
        %v677 = vpop.f32.mrb[0].mxu0
        %678 = vmatprep.mubr.f32.mxu0 0.0
        %679 = vmatmul.mubr.f32.gmra.mrb[0].mxu0 %v551
        %v680 = vpop.f32.mrb[0].mxu0
        %v681 = vadd.f32 %v523, %v680
        %v682 = vpop.f32.mrb[0].mxu0
        %683 = vmatprep.mubr.f32.mxu0 0.0
        %684 = vmatmul.mubr.f32.gmra.mrb[0].mxu0 %v554
        %v685 = vpop.f32.mrb[0].mxu0
        %v686 = vadd.f32 %v523, %v685
        %v687 = vpop.f32.mrb[0].mxu0
        %688 = vmatprep.mubr.f32.mxu0 0.0
        %689 = vmatmul.mubr.f32.gmra.mrb[0].mxu0 %v557
        %v690 = vpop.f32.mrb[0].mxu0
        %v691 = vadd.f32 %v523, %v690
        %v692 = vpop.f32.mrb[0].mxu0
        %693 = vmatprep.mubr.f32.mxu0 0.0
        %694 = vmatmul.mubr.f32.gmra.mrb[0].mxu0 %v560
        %v695 = vpop.f32.mrb[0].mxu0
        %v696 = vadd.f32 %v523, %v695
        %v697 = vpop.f32.mrb[0].mxu0
        %698 = vmatprep.mubr.f32.mxu0 0.0
        %699 = vmatmul.mubr.f32.gmra.mrb[0].mxu0 %v563
        %v700 = vpop.f32.mrb[0].mxu0
        %v701 = vadd.f32 %v523, %v700
        %v702 = vpop.f32.mrb[0].mxu0
        %703 = vmatprep.mubr.f32.mxu0 0.0
        %704 = vmatmul.mubr.f32.gmra.mrb[0].mxu0 %v566
        %v705 = vpop.f32.mrb[0].mxu0
        %v706 = vadd.f32 %v523, %v705
        %v707 = vpop.f32.mrb[0].mxu0
        %708 = vmatprep.mubr.f32.mxu0 0.0
        %709 = vmatmul.mubr.f32.gmra.mrb[0].mxu0 %v569
        %v710 = vpop.f32.mrb[0].mxu0
        %v711 = vadd.f32 %v523, %v710
        %v712 = vpop.f32.mrb[0].mxu0
        %713 = vmatprep.mubr.f32.mxu0 0.0
        %714 = vmatmul.mubr.f32.gmra.mrb[0].mxu0 %v572
        %v715 = vpop.f32.mrb[0].mxu0
        %v716 = vadd.f32 %v523, %v715
        %v717 = vpop.f32.mrb[0].mxu0
        %718 = vdwg.mxu0
        %v719 = vmax.f32 %v641, 0.0
        %v720 = vmax.f32 %v646, 0.0
        %v721 = vmax.f32 %v651, 0.0
        %v722 = vmax.f32 %v656, 0.0
        %v723 = vmax.f32 %v661, 0.0
        %v724 = vmax.f32 %v666, 0.0
        %v725 = vmax.f32 %v671, 0.0
        %v726 = vmax.f32 %v676, 0.0
        %v727 = vmax.f32 %v681, 0.0
        %v728 = vmax.f32 %v686, 0.0
        %v729 = vmax.f32 %v691, 0.0
        %v730 = vmax.f32 %v696, 0.0
        %v731 = vmax.f32 %v701, 0.0
        %v732 = vmax.f32 %v706, 0.0
        %v733 = vmax.f32 %v711, 0.0
        %v734 = vmax.f32 %v716, 0.0
        %v735 = vld [vmem:[%s5] sm:$0xff]
        %v736 = vld [vmem:[%s5 + $0x8] sm:$0xff]
        %v737 = vld [vmem:[%s5 + $0x10] sm:$0xff]
        %v738 = vld [vmem:[%s5 + $0x18] sm:$0xff]
        %v739 = vld [vmem:[%s6] sm:$0x1]
        %v741 = vlaneseq
        %v742 = vshrl.u32 %v741, 7
        %v743 = vsub.s32 0, %v742
        %v744 = vrot.slane %v739, %v743
        %vm746 = vcmask 261120
        %v748 = vsel %vm746, %v719, 0
        %v751 = vsel %vm746, %v720, 0
        %v754 = vsel %vm746, %v721, 0
        %v757 = vsel %vm746, %v722, 0
        %v760 = vsel %vm746, %v723, 0
        %v763 = vsel %vm746, %v724, 0
        %v766 = vsel %vm746, %v725, 0
        %v769 = vsel %vm746, %v726, 0
        %v772 = vsel %vm746, %v727, 0
        %v775 = vsel %vm746, %v728, 0
        %v778 = vsel %vm746, %v729, 0
        %v781 = vsel %vm746, %v730, 0
        %v784 = vsel %vm746, %v731, 0
        %v787 = vsel %vm746, %v732, 0
        %v790 = vsel %vm746, %v733, 0
        %v793 = vsel %vm746, %v734, 0
        %795 = vmatprep.subr.mxu0 0.0
        %796 = vmatpush1.msra.mxu0 %v735
        %797 = vmatprep.subr.mxu0 0.0
        %798 = vmatpush1.msra.mxu0 %v736
        %799 = vmatprep.subr.mxu0 0.0
        %800 = vmatpush1.msra.mxu0 %v737
        %801 = vmatprep.subr.mxu0 0.0
        %802 = vmatpush1.msra.mxu0 %v738
        %803 = vmatprep.subr.mxu0 0.0
        %804 = vmatpush1.msra.mxu0 0.0
        %805 = vmatprep.subr.mxu0 0.0
        %806 = vmatpush1.msra.mxu0 0.0
        %807 = vmatprep.subr.mxu0 0.0
        %808 = vmatpush1.msra.mxu0 0.0
        %809 = vmatprep.subr.mxu0 0.0
        %810 = vmatpush1.msra.mxu0 0.0
        %811 = vmatprep.subr.mxu0 0.0
        %812 = vmatpush1.msra.mxu0 0.0
        %813 = vmatprep.subr.mxu0 0.0
        %814 = vmatpush1.msra.mxu0 0.0
        %815 = vmatprep.subr.mxu0 0.0
        %816 = vmatpush1.msra.mxu0 0.0
        %817 = vmatprep.subr.mxu0 0.0
        %818 = vmatpush1.msra.mxu0 0.0
        %819 = vmatprep.subr.mxu0 0.0
        %820 = vmatpush1.msra.mxu0 0.0
        %821 = vmatprep.subr.mxu0 0.0
        %822 = vmatpush1.msra.mxu0 0.0
        %823 = vmatprep.subr.mxu0 0.0
        %824 = vmatpush1.msra.mxu0 0.0
        %825 = vmatprep.subr.mxu0 0.0
        %826 = vmatpush1.msra.mxu0 0.0
        %827 = vmatprep.subr.mxu0 0.0
        %828 = vmatpush1.msra.mxu0 0.0
        %829 = vmatprep.subr.mxu0 0.0
        %830 = vmatpush1.msra.mxu0 0.0
        %831 = vmatprep.subr.mxu0 0.0
        %832 = vmatpush1.msra.mxu0 0.0
        %833 = vmatprep.subr.mxu0 0.0
        %834 = vmatpush1.msra.mxu0 0.0
        %835 = vmatprep.subr.mxu0 0.0
        %836 = vmatpush1.msra.mxu0 0.0
        %837 = vmatprep.subr.mxu0 0.0
        %838 = vmatpush1.msra.mxu0 0.0
        %839 = vmatprep.subr.mxu0 0.0
        %840 = vmatpush1.msra.mxu0 0.0
        %841 = vmatprep.subr.mxu0 0.0
        %842 = vmatpush1.msra.mxu0 0.0
        %843 = vmatprep.subr.mxu0 0.0
        %844 = vmatpush1.msra.mxu0 0.0
        %845 = vmatprep.subr.mxu0 0.0
        %846 = vmatpush1.msra.mxu0 0.0
        %847 = vmatprep.subr.mxu0 0.0
        %848 = vmatpush1.msra.mxu0 0.0
        %849 = vmatprep.subr.mxu0 0.0
        %850 = vmatpush1.msra.mxu0 0.0
        %851 = vmatprep.subr.mxu0 0.0
        %852 = vmatpush1.msra.mxu0 0.0
        %853 = vmatprep.subr.mxu0 0.0
        %854 = vmatpush1.msra.mxu0 0.0
        %855 = vmatprep.subr.mxu0 0.0
        %856 = vmatpush1.msra.mxu0 0.0
        %857 = vmatprep.subr.mxu0 0.0
        %858 = vmatpush1.msra.mxu0 0.0
        %859 = vmatprep.mubr.f32.mxu0 0.0
        %860 = vmatmul.mubr.f32.gmra.mrb[0].mxu0 %v748
        %v861 = vpop.f32.mrb[0].mxu0
        %v862 = vadd.f32 %v744, %v861
        %v863 = vpop.f32.mrb[0].mxu0
        %864 = vmatprep.mubr.f32.mxu0 0.0
        %865 = vmatmul.mubr.f32.gmra.mrb[0].mxu0 %v751
        %v866 = vpop.f32.mrb[0].mxu0
        %v867 = vadd.f32 %v744, %v866
        %v868 = vpop.f32.mrb[0].mxu0
        %869 = vmatprep.mubr.f32.mxu0 0.0
        %870 = vmatmul.mubr.f32.gmra.mrb[0].mxu0 %v754
        %v871 = vpop.f32.mrb[0].mxu0
        %v872 = vadd.f32 %v744, %v871
        %v873 = vpop.f32.mrb[0].mxu0
        %874 = vmatprep.mubr.f32.mxu0 0.0
        %875 = vmatmul.mubr.f32.gmra.mrb[0].mxu0 %v757
        %v876 = vpop.f32.mrb[0].mxu0
        %v877 = vadd.f32 %v744, %v876
        %v878 = vpop.f32.mrb[0].mxu0
        %879 = vmatprep.mubr.f32.mxu0 0.0
        %880 = vmatmul.mubr.f32.gmra.mrb[0].mxu0 %v760
        %v881 = vpop.f32.mrb[0].mxu0
        %v882 = vadd.f32 %v744, %v881
        %v883 = vpop.f32.mrb[0].mxu0
        %884 = vmatprep.mubr.f32.mxu0 0.0
        %885 = vmatmul.mubr.f32.gmra.mrb[0].mxu0 %v763
        %v886 = vpop.f32.mrb[0].mxu0
        %v887 = vadd.f32 %v744, %v886
        %v888 = vpop.f32.mrb[0].mxu0
        %889 = vmatprep.mubr.f32.mxu0 0.0
        %890 = vmatmul.mubr.f32.gmra.mrb[0].mxu0 %v766
        %v891 = vpop.f32.mrb[0].mxu0
        %v892 = vadd.f32 %v744, %v891
        %v893 = vpop.f32.mrb[0].mxu0
        %894 = vmatprep.mubr.f32.mxu0 0.0
        %895 = vmatmul.mubr.f32.gmra.mrb[0].mxu0 %v769
        %v896 = vpop.f32.mrb[0].mxu0
        %v897 = vadd.f32 %v744, %v896
        %v898 = vpop.f32.mrb[0].mxu0
        %899 = vmatprep.mubr.f32.mxu0 0.0
        %900 = vmatmul.mubr.f32.gmra.mrb[0].mxu0 %v772
        %v901 = vpop.f32.mrb[0].mxu0
        %v902 = vadd.f32 %v744, %v901
        %v903 = vpop.f32.mrb[0].mxu0
        %904 = vmatprep.mubr.f32.mxu0 0.0
        %905 = vmatmul.mubr.f32.gmra.mrb[0].mxu0 %v775
        %v906 = vpop.f32.mrb[0].mxu0
        %v907 = vadd.f32 %v744, %v906
        %v908 = vpop.f32.mrb[0].mxu0
        %909 = vmatprep.mubr.f32.mxu0 0.0
        %910 = vmatmul.mubr.f32.gmra.mrb[0].mxu0 %v778
        %v911 = vpop.f32.mrb[0].mxu0
        %v912 = vadd.f32 %v744, %v911
        %v913 = vpop.f32.mrb[0].mxu0
        %914 = vmatprep.mubr.f32.mxu0 0.0
        %915 = vmatmul.mubr.f32.gmra.mrb[0].mxu0 %v781
        %v916 = vpop.f32.mrb[0].mxu0
        %v917 = vadd.f32 %v744, %v916
        %v918 = vpop.f32.mrb[0].mxu0
        %919 = vmatprep.mubr.f32.mxu0 0.0
        %920 = vmatmul.mubr.f32.gmra.mrb[0].mxu0 %v784
        %v921 = vpop.f32.mrb[0].mxu0
        %v922 = vadd.f32 %v744, %v921
        %v923 = vpop.f32.mrb[0].mxu0
        %924 = vmatprep.mubr.f32.mxu0 0.0
        %925 = vmatmul.mubr.f32.gmra.mrb[0].mxu0 %v787
        %v926 = vpop.f32.mrb[0].mxu0
        %v927 = vadd.f32 %v744, %v926
        %v928 = vpop.f32.mrb[0].mxu0
        %929 = vmatprep.mubr.f32.mxu0 0.0
        %930 = vmatmul.mubr.f32.gmra.mrb[0].mxu0 %v790
        %v931 = vpop.f32.mrb[0].mxu0
        %v932 = vadd.f32 %v744, %v931
        %v933 = vpop.f32.mrb[0].mxu0
        %934 = vmatprep.mubr.f32.mxu0 0.0
        %935 = vmatmul.mubr.f32.gmra.mrb[0].mxu0 %v793
        %v936 = vpop.f32.mrb[0].mxu0
        %v937 = vadd.f32 %v744, %v936
        %v938 = vpop.f32.mrb[0].mxu0
        %939 = vdwg.mxu0
        %vm940 = vcmask 130048
        %941 = vst.msk [vmem:[%s299] sm:$0xff] %vm940, %v862
        %942 = vst.msk [vmem:[%s299 + $0x8] sm:$0xff] %vm940, %v867
        %943 = vst.msk [vmem:[%s299 + $0x10] sm:$0xff] %vm940, %v872
        %944 = vst.msk [vmem:[%s299 + $0x18] sm:$0xff] %vm940, %v877
        %945 = vst.msk [vmem:[%s299 + $0x20] sm:$0xff] %vm940, %v882
        %946 = vst.msk [vmem:[%s299 + $0x28] sm:$0xff] %vm940, %v887
        %947 = vst.msk [vmem:[%s299 + $0x30] sm:$0xff] %vm940, %v892
        %948 = vst.msk [vmem:[%s299 + $0x38] sm:$0xff] %vm940, %v897
        %949 = vst.msk [vmem:[%s299 + $0x40] sm:$0xff] %vm940, %v902
        %950 = vst.msk [vmem:[%s299 + $0x48] sm:$0xff] %vm940, %v907
        %951 = vst.msk [vmem:[%s299 + $0x50] sm:$0xff] %vm940, %v912
        %952 = vst.msk [vmem:[%s299 + $0x58] sm:$0xff] %vm940, %v917
        %953 = vst.msk [vmem:[%s299 + $0x60] sm:$0xff] %vm940, %v922
        %954 = vst.msk [vmem:[%s299 + $0x68] sm:$0xff] %vm940, %v927
        %955 = vst.msk [vmem:[%s299 + $0x70] sm:$0xff] %vm940, %v932
        %956 = vst.msk [vmem:[%s299 + $0x78] sm:$0xff] %vm940, %v937
        %s957 = smul.u32 16, %s21
        %p958 = scmp.lt.s32.totalorder %s957, 31
        %s959 = scalar_select %p958, %s957, 31
        %s960 = smul.addr %s959, 8
        %s961 = scalar_lea.vmem %s7, %s960
        // Predicated region
        $region53: #{tpu_custom_call.1} parent=47 // pred_check
          %p962 = pneg %p191
        $region54: #{tpu_custom_call.1} parent=47 // pred_check_branch
          %964 = sbr.rel (%p962) target = $region56
        $region55: #{tpu_custom_call.1} parent=47 // pred_region
          %s965 = smul.u32 16, %s21
        $region56: #{tpu_custom_call.1} parent=47 // pred_fallthru
          _
      $region48: #{tpu_custom_call.1} parent=5 // pred_fallthru
        _
      %p966 = scmp.le.s32.totalorder 2, %s16
      // Predicated region
      $region57: #{tpu_custom_call.1} parent=5 // pred_check
        %p967 = pneg %p966
      $region58: #{tpu_custom_call.1} parent=5 // pred_check_branch
        %969 = sbr.rel (%p967) target = $region60
      $region59: #{tpu_custom_call.1} parent=5 // pred_region
        %s970 = ssub.s32 %s16, 2
        // Predicated region
        $region61: #{tpu_custom_call.1} parent=59 // pred_check
          %p971 = pneg %p197
        $region62: #{tpu_custom_call.1} parent=59 // pred_check_branch
          %973 = sbr.rel (%p971) target = $region64
        $region63: #{tpu_custom_call.1} parent=59 // pred_region
          %s974 = smul.u32 16, %s22
          %p975 = scmp.lt.s32.totalorder %s974, 31
          %s976 = scalar_select %p975, %s974, 31
          %s977 = smul.addr %s976, 8
          %s978 = scalar_lea.vmem %s7, %s977
        $region64: #{tpu_custom_call.1} parent=59 // pred_fallthru
          _
      $region60: #{tpu_custom_call.1} parent=5 // pred_fallthru
        _
    $region6: #{tpu_custom_call.1} parent=1 // loop_footer
      %s20 = sadd.s32 1, %s16
    $region7: #{tpu_custom_call.1} parent=1 // loop_footer_branch
      %15 = sbr.rel target = $region3
    $region8: #{tpu_custom_call.1} parent=1 // loop_exit
      _
    %979 = vsyncpa [#allocation3], 1
    %s980 = scalar_lea.sflag [#allocation3], 1
    %981 = vsyncpa %s980, 1

</llo_original>
